<compile_context>
chip_gen: v5e
topology: v5e:2x2
jax: 0.10.0
libtpu: 0.0.40
codegen_flags: <defaults>
</compile_context>

<pallas_src>
import functools
import math

import jax
import jax.numpy as jnp
from jax.experimental import pallas as pl
from jax.experimental.pallas import tpu as pltpu


# ---------------------------------------------------------------------------
# VMEM budget / batch-tile selection (generation-aware)
# ---------------------------------------------------------------------------
# Live (H, W)-sized f32/i32 temporaries inside one channel-loop iteration
# (shifted operands, t/u, gx/gy, masks, accumulator, grad-norm, ...).
_N_STENCIL_TEMPS = 14


def _vmem_limit_bytes():
    """~64 MiB scoped VMEM on 128-MiB parts (v5e/v6e), ~48 MiB on 64-MiB v7x."""
    cap = 64 * 1024 * 1024
    try:
        info = pltpu.get_tpu_info()
        cap = int(getattr(info, "vmem_capacity_bytes", cap)) or cap
    except Exception:  # API/backend unavailable -> conservative default
        pass
    return min(cap * 3 // 4, 64 * 1024 * 1024)


def _pick_batch_tile(B, C, H, W, *, extra_hw_inputs, vmem_limit):
    """Largest divisor of B whose per-step footprint (double-buffered input
    blocks + double-buffered output + stencil temporaries) fits ~90% of the
    VMEM limit, capped at ceil(B/2) so the grid has >= 2 steps (v7x megacore)."""
    budget = int(vmem_limit * 0.9)
    # f32 bytes per batch element:
    #   2x-double-buffered inputs: (C + extra_hw_inputs) * H * W each
    #   2x-double-buffered output: 1 * H * W
    #   in-kernel temporaries:     _N_STENCIL_TEMPS * H * W
    per_batch = 4 * H * W * (2 * (C + extra_hw_inputs) + 2 + _N_STENCIL_TEMPS)
    bt = int(max(1, min(B, budget // max(per_batch, 1))))
    bt = min(bt, max(1, -(-B // 2)))  # ceil(B/2) cap -> >= 2 grid steps
    while B % bt:
        bt -= 1
    # TODO(synk): for images so large that even bt == 1 exceeds the budget, add
    # an H-tile grid axis with a 1-row halo (W stays full-width on the lane
    # axis) so the auto-pipeline has something to overlap.
    return bt


# ---------------------------------------------------------------------------
# Shared in-kernel math: separable Scharr with in-kernel zero padding
# ---------------------------------------------------------------------------
# Separable Scharr (cross-correlation, zero padding); everything scaled by 32:
#   t[i,j] = 3*x[i-1,j] + 10*x[i,j] + 3*x[i+1,j];  32*gx = t[i,j+1] - t[i,j-1]
#   u[i,j] = x[i+1,j] - x[i-1,j];                  32*gy = 3*(u[i,j-1]+u[i,j+1]) + 10*u[i,j]
# Zero padding: out-of-range rows/cols of x (and hence of t/u) are zero.


def _scharr_sq_channels_rolled(x_ref, Bt, C, H, W):
    """Aligned path (H % 8 == 0, W % 128 == 0): pltpu.roll + boundary masks.

    Works on a folded rank-2 (Bt*H, W) view (reshape is layout-trivial since
    H % 8 == 0); rows that wrap across image boundaries are zeroed by the same
    masks that realize the conv's zero padding.  Returns (Bt, H, W)."""
    R = Bt * H
    row = jnp.reshape(
        jax.lax.broadcasted_iota(jnp.int32, (Bt, H, W), dimension=1), (R, W))
    col = jax.lax.broadcasted_iota(jnp.int32, (R, W), dimension=1)
    not_top, not_bot = row > 0, row < H - 1
    not_left, not_right = col > 0, col < W - 1
    zero = jnp.float32(0.0)

    acc = jnp.zeros((R, W), jnp.float32)
    for c in range(C):  # static unroll; C is small (1-4 for images)
        xc = jnp.reshape(x_ref[:, c, :, :], (R, W))
        # pltpu.roll follows jnp.roll semantics (out[i] = in[(i - shift) % n]);
        # shifts kept non-negative (roll by n-1 == roll by -1).
        x_up = jnp.where(not_top, pltpu.roll(xc, 1, axis=0), zero)        # x[i-1, j]
        x_dn = jnp.where(not_bot, pltpu.roll(xc, R - 1, axis=0), zero)    # x[i+1, j]
        t = 3.0 * (x_up + x_dn) + 10.0 * xc                               # vertical smooth
        u = x_dn - x_up                                                   # vertical diff
        t_l = jnp.where(not_left, pltpu.roll(t, 1, axis=1), zero)
        t_r = jnp.where(not_right, pltpu.roll(t, W - 1, axis=1), zero)
        u_l = jnp.where(not_left, pltpu.roll(u, 1, axis=1), zero)
        u_r = jnp.where(not_right, pltpu.roll(u, W - 1, axis=1), zero)
        gx = t_r - t_l                                                    # 32 * grad_x
        gy = 3.0 * (u_l + u_r) + 10.0 * u                                 # 32 * grad_y
        acc = acc + (gx * gx + gy * gy)
    return jnp.reshape(acc, (Bt, H, W))


def _scharr_sq_channels_concat(x_ref, Bt, C, H, W):
    """Fallback for lane/sublane extents the Mosaic rotate op does not support
    (W % 128 != 0 or H % 8 != 0, e.g. small test images).  Returns (Bt, H, W)."""
    zrow = jnp.zeros((Bt, 1, W), jnp.float32)
    zcol = jnp.zeros((Bt, H, 1), jnp.float32)
    acc = jnp.zeros((Bt, H, W), jnp.float32)
    for c in range(C):  # static unroll; C is small
        xc = x_ref[:, c, :, :]
        x_up = jnp.concatenate([zrow, xc[:, : H - 1, :]], axis=1)
        x_dn = jnp.concatenate([xc[:, 1:, :], zrow], axis=1)
        t = 3.0 * (x_up + x_dn) + 10.0 * xc
        u = x_dn - x_up
        t_l = jnp.concatenate([zcol, t[:, :, : W - 1]], axis=2)
        t_r = jnp.concatenate([t[:, :, 1:], zcol], axis=2)
        u_l = jnp.concatenate([zcol, u[:, :, : W - 1]], axis=2)
        u_r = jnp.concatenate([u[:, :, 1:], zcol], axis=2)
        gx = t_r - t_l
        gy = 3.0 * (u_l + u_r) + 10.0 * u
        acc = acc + (gx * gx + gy * gy)
    return acc


def _scharr_sq_sum(x_ref):
    """x_ref: (Bt, C, H, W) ref -> sum_c((32*gx)^2 + (32*gy)^2), shape (Bt, H, W)."""
    Bt, C, H, W = x_ref.shape
    if H % 8 == 0 and W % 128 == 0:
        return _scharr_sq_channels_rolled(x_ref, Bt, C, H, W)
    return _scharr_sq_channels_concat(x_ref, Bt, C, H, W)


# ---------------------------------------------------------------------------
# Kernel 1: Scharr gradient-norm (used on the downsampled ground truth)
# ---------------------------------------------------------------------------
def _scharr_norm_kernel(x_ref, out_ref):
    sq = _scharr_sq_sum(x_ref)                               # (bt, H, W)
    # 1/32 per-gradient scale folded into one multiply: sqrt(sq)/32 == sqrt(sq/1024)
    out_ref[:, 0, :, :] = jnp.sqrt(sq * (1.0 / 1024.0))


def scharr_grad_norm(x):
    """x: (B, C, H, W) float32 -> (B, 1, H, W) Scharr gradient magnitude."""
    x = x.astype(jnp.float32)
    B, C, H, W = x.shape
    vmem_limit = _vmem_limit_bytes()
    bt = _pick_batch_tile(B, C, H, W, extra_hw_inputs=0, vmem_limit=vmem_limit)
    # TODO(synk): if the downsampled width is < 128 for the real workload, fold
    # (dh, dw) onto the lane axis (lane-dense stores) or accept the small
    # kernel as launch-overhead dominated.
    return pl.pallas_call(
        _scharr_norm_kernel,
        out_shape=jax.ShapeDtypeStruct((B, 1, H, W), jnp.float32),
        grid=(B // bt,),
        in_specs=[pl.BlockSpec((bt, C, H, W), lambda b: (b, 0, 0, 0))],
        out_specs=pl.BlockSpec((bt, 1, H, W), lambda b: (b, 0, 0, 0)),
        compiler_params=pltpu.CompilerParams(
            dimension_semantics=("parallel",),
            vmem_limit_bytes=vmem_limit,
        ),
    )(x)


# ---------------------------------------------------------------------------
# Kernel 2 (fused): Scharr grad-norm of prediction + threshold mask + mean
# ---------------------------------------------------------------------------
def _fused_masked_sum_kernel(thresh_ref, x_ref, up_ref, out_ref, *, inv_n):
    sq = _scharr_sq_sum(x_ref)                               # (bt, H, W)
    gnorm = jnp.sqrt(sq * (1.0 / 1024.0))
    # strict '<' mask (matches torch `upsampled < grad_threshold`), applied via
    # select -- no cast + extra multiply.
    masked = jnp.where(up_ref[:, 0, :, :] < thresh_ref[0], gnorm, jnp.float32(0.0))
    partial = jnp.sum(masked) * jnp.float32(inv_n)
    # Blocked, lane-dense (1, 1, 128) partial-sum block per grid step: keeps the
    # batch axis safely "parallel" for v7x's two TensorCores.
    out_ref[...] = jnp.broadcast_to(partial, out_ref.shape)


def fused_masked_grad_mean(img, up, thresh):
    """mean(scharr_norm(img) * (up < thresh)) without materializing grad_img."""
    img = img.astype(jnp.float32)
    up = up.astype(jnp.float32)
    B, C, H, W = img.shape
    vmem_limit = _vmem_limit_bytes()
    bt = _pick_batch_tile(B, C, H, W, extra_hw_inputs=1, vmem_limit=vmem_limit)
    g = B // bt
    t = jnp.reshape(thresh, (1,)).astype(jnp.float32)
    inv_n = 1.0 / float(B * 1 * H * W)

    kernel = functools.partial(_fused_masked_sum_kernel, inv_n=inv_n)
    partials = pl.pallas_call(
        kernel,
        out_shape=jax.ShapeDtypeStruct((g, 1, 128), jnp.float32),
        grid=(g,),
        in_specs=[
            pl.BlockSpec(memory_space=pltpu.MemorySpace.SMEM),       # thresh scalar
            pl.BlockSpec((bt, C, H, W), lambda b: (b, 0, 0, 0)),     # prediction tile
            pl.BlockSpec((bt, 1, H, W), lambda b: (b, 0, 0, 0)),     # upsampled grad tile
        ],
        out_specs=pl.BlockSpec((1, 1, 128), lambda b: (b, 0, 0)),    # per-step partials
        compiler_params=pltpu.CompilerParams(
            dimension_semantics=("parallel",),
            vmem_limit_bytes=vmem_limit,
        ),
    )(t, img, up)
    # TODO(synk): fuse the fixed 2x bilinear upsample of grad_down into this
    # kernel (read (B,1,dh,dw) instead of (B,1,H,W)); `up` must still be
    # materialized once for the global quantile, so the win is only the re-read.
    # TODO(synk): on v5e, if DMA becomes exposed after the stencil fixes, add
    # pipeline_mode=pl.Buffered(3) on the prediction in_spec (measure first;
    # do not deepen buffering on v7x).
    return jnp.sum(partials[:, 0, 0])


# ---------------------------------------------------------------------------
# Plain-JAX glue: shape normalization, bilinear resize, quantile
# ---------------------------------------------------------------------------
def normalize_shape(a, b):
    if a.shape != b.shape:
        raise ValueError("Input images must have the same dimensions.")
    if a.ndim == 4:
        pass
    elif a.ndim == 3:
        a, b = a[None], b[None]
    elif a.ndim == 2:
        a, b = a[None, None], b[None, None]
    else:
        raise ValueError("Input images must have 2, 3, or 4 dimensions.")
    return a, b


def _bilinear_resize(x, out_h, out_w):
    """Matches torch F.interpolate(mode='bilinear', align_corners=False)."""
    # TODO(synk): data-dependent gather; kept in plain JAX (no clean Pallas form).
    B, C, H, W = x.shape

    def idx(out_size, in_size):
        i = jnp.arange(out_size, dtype=jnp.float32)
        src = jnp.maximum((i + 0.5) * (in_size / out_size) - 0.5, 0.0)
        i0 = jnp.minimum(jnp.floor(src).astype(jnp.int32), in_size - 1)
        i1 = jnp.minimum(i0 + 1, in_size - 1)
        frac = src - i0.astype(jnp.float32)
        return i0, i1, frac

    r0, r1, fr = idx(out_h, H)
    c0, c1, fc = idx(out_w, W)

    top = x[:, :, r0, :]
    bot = x[:, :, r1, :]
    rows = top * (1.0 - fr)[None, None, :, None] + bot * fr[None, None, :, None]
    left = rows[:, :, :, c0]
    right = rows[:, :, :, c1]
    return left * (1.0 - fc)[None, None, None, :] + right * fc[None, None, None, :]


def smoothness_loss(img, img_gt, *, quantile=0.3, scale_factor=0.5):
    img, img_gt = normalize_shape(img, img_gt)
    img = img.astype(jnp.float32)
    img_gt = img_gt.astype(jnp.float32)
    B, C, H, W = img_gt.shape

    # _low_grad_mask on img_gt (mask itself is fused into the reduction kernel)
    dh = int(math.floor(H * scale_factor))
    dw = int(math.floor(W * scale_factor))
    down = _bilinear_resize(img_gt, dh, dw)       # bilinear downsample
    grad_down = scharr_grad_norm(down)            # Pallas: (B, 1, dh, dw)
    up = _bilinear_resize(grad_down, H, W)        # bilinear upsample to (H, W)
    # TODO(synk): global quantile needs a full sort; kept as jnp.quantile (matches
    # torch.quantile's default 'linear' interpolation).
    thresh = jnp.quantile(up, quantile)

    # Fused Pallas kernel: grad-norm of prediction + threshold mask + mean
    return fused_masked_grad_mean(img, up, thresh)


if __name__ == "__main__":
    key = jax.random.PRNGKey(0)
    k1, k2 = jax.random.split(key)
    B, C, H, W = 2, 4, 16, 16
    img = jax.random.normal(k1, (B, C, H, W), dtype=jnp.float32)
    img_gt = jax.random.normal(k2, (B, C, H, W), dtype=jnp.float32)

    loss = smoothness_loss(img, img_gt)
    jax.block_until_ready(loss)
    assert loss.shape == () and bool(jnp.isfinite(loss))
    print("KERNEL_OK")
</pallas_src>

<mosaic_0001>
module attributes {stable_mosaic.version = 11 : i64} {
  func.func @_scharr_norm_kernel(%arg0: i32, %arg1: memref<1x4x8x8xf32, #tpu.memory_space<vmem>>, %arg2: memref<1x1x8x8xf32, #tpu.memory_space<vmem>>) attributes {dimension_semantics = [#tpu.dimension_semantics<parallel>], iteration_bounds = array<i64: 2>, scalar_prefetch = 0 : i64, scratch_operands = 0 : i64, tpu.core_type = #tpu.core_type<tc>, window_params = [{transform_indices = @transform_0, window_bounds = array<i64: 1, 4, 8, 8>}, {transform_indices = @transform_1, window_bounds = array<i64: 1, 1, 8, 8>}]} {
    %cst = arith.constant 0.000000e+00 : f32
    %0 = vector.broadcast %cst : f32 to vector<1x1x8xf32>
    %cst_0 = arith.constant 0.000000e+00 : f32
    %1 = vector.broadcast %cst_0 : f32 to vector<1x8x1xf32>
    %cst_1 = arith.constant 0.000000e+00 : f32
    %2 = vector.broadcast %cst_1 : f32 to vector<1x8x8xf32>
    %c0 = arith.constant 0 : index
    %c0_2 = arith.constant 0 : index
    %c0_3 = arith.constant 0 : index
    %c0_4 = arith.constant 0 : index
    %3 = vector.load %arg1[%c0, %c0_2, %c0_3, %c0_4] : memref<1x4x8x8xf32, #tpu.memory_space<vmem>>, vector<1x1x8x8xf32>
    %4 = vector.shape_cast %3 : vector<1x1x8x8xf32> to vector<1x8x8xf32>
    %5 = vector.extract_strided_slice %4 {offsets = [0, 0, 0], sizes = [1, 7, 8], strides = [1, 1, 1]} : vector<1x8x8xf32> to vector<1x7x8xf32>
    %6 = tpu.concatenate %0, %5 in 1 : vector<1x1x8xf32>, vector<1x7x8xf32> -> vector<1x8x8xf32>
    %7 = vector.extract_strided_slice %4 {offsets = [0, 1, 0], sizes = [1, 7, 8], strides = [1, 1, 1]} : vector<1x8x8xf32> to vector<1x7x8xf32>
    %8 = tpu.concatenate %7, %0 in 1 : vector<1x7x8xf32>, vector<1x1x8xf32> -> vector<1x8x8xf32>
    %9 = arith.addf %6, %8 : vector<1x8x8xf32>
    %cst_5 = arith.constant 3.000000e+00 : f32
    %10 = vector.broadcast %cst_5 : f32 to vector<1x8x8xf32>
    %11 = arith.mulf %10, %9 : vector<1x8x8xf32>
    %cst_6 = arith.constant 1.000000e+01 : f32
    %12 = vector.broadcast %cst_6 : f32 to vector<1x8x8xf32>
    %13 = arith.mulf %12, %4 : vector<1x8x8xf32>
    %14 = arith.addf %11, %13 : vector<1x8x8xf32>
    %15 = arith.subf %8, %6 : vector<1x8x8xf32>
    %16 = vector.extract_strided_slice %14 {offsets = [0, 0, 0], sizes = [1, 8, 7], strides = [1, 1, 1]} : vector<1x8x8xf32> to vector<1x8x7xf32>
    %17 = tpu.concatenate %1, %16 in 2 : vector<1x8x1xf32>, vector<1x8x7xf32> -> vector<1x8x8xf32>
    %18 = vector.extract_strided_slice %14 {offsets = [0, 0, 1], sizes = [1, 8, 7], strides = [1, 1, 1]} : vector<1x8x8xf32> to vector<1x8x7xf32>
    %19 = tpu.concatenate %18, %1 in 2 : vector<1x8x7xf32>, vector<1x8x1xf32> -> vector<1x8x8xf32>
    %20 = vector.extract_strided_slice %15 {offsets = [0, 0, 0], sizes = [1, 8, 7], strides = [1, 1, 1]} : vector<1x8x8xf32> to vector<1x8x7xf32>
    %21 = tpu.concatenate %1, %20 in 2 : vector<1x8x1xf32>, vector<1x8x7xf32> -> vector<1x8x8xf32>
    %22 = vector.extract_strided_slice %15 {offsets = [0, 0, 1], sizes = [1, 8, 7], strides = [1, 1, 1]} : vector<1x8x8xf32> to vector<1x8x7xf32>
    %23 = tpu.concatenate %22, %1 in 2 : vector<1x8x7xf32>, vector<1x8x1xf32> -> vector<1x8x8xf32>
    %24 = arith.subf %19, %17 : vector<1x8x8xf32>
    %25 = arith.addf %21, %23 : vector<1x8x8xf32>
    %cst_7 = arith.constant 3.000000e+00 : f32
    %26 = vector.broadcast %cst_7 : f32 to vector<1x8x8xf32>
    %27 = arith.mulf %26, %25 : vector<1x8x8xf32>
    %cst_8 = arith.constant 1.000000e+01 : f32
    %28 = vector.broadcast %cst_8 : f32 to vector<1x8x8xf32>
    %29 = arith.mulf %28, %15 : vector<1x8x8xf32>
    %30 = arith.addf %27, %29 : vector<1x8x8xf32>
    %31 = arith.mulf %24, %24 : vector<1x8x8xf32>
    %32 = arith.mulf %30, %30 : vector<1x8x8xf32>
    %33 = arith.addf %31, %32 : vector<1x8x8xf32>
    %34 = arith.addf %2, %33 : vector<1x8x8xf32>
    %c0_9 = arith.constant 0 : index
    %c1 = arith.constant 1 : index
    %c0_10 = arith.constant 0 : index
    %c0_11 = arith.constant 0 : index
    %35 = vector.load %arg1[%c0_9, %c1, %c0_10, %c0_11] : memref<1x4x8x8xf32, #tpu.memory_space<vmem>>, vector<1x1x8x8xf32>
    %36 = vector.shape_cast %35 : vector<1x1x8x8xf32> to vector<1x8x8xf32>
    %37 = vector.extract_strided_slice %36 {offsets = [0, 0, 0], sizes = [1, 7, 8], strides = [1, 1, 1]} : vector<1x8x8xf32> to vector<1x7x8xf32>
    %38 = tpu.concatenate %0, %37 in 1 : vector<1x1x8xf32>, vector<1x7x8xf32> -> vector<1x8x8xf32>
    %39 = vector.extract_strided_slice %36 {offsets = [0, 1, 0], sizes = [1, 7, 8], strides = [1, 1, 1]} : vector<1x8x8xf32> to vector<1x7x8xf32>
    %40 = tpu.concatenate %39, %0 in 1 : vector<1x7x8xf32>, vector<1x1x8xf32> -> vector<1x8x8xf32>
    %41 = arith.addf %38, %40 : vector<1x8x8xf32>
    %cst_12 = arith.constant 3.000000e+00 : f32
    %42 = vector.broadcast %cst_12 : f32 to vector<1x8x8xf32>
    %43 = arith.mulf %42, %41 : vector<1x8x8xf32>
    %cst_13 = arith.constant 1.000000e+01 : f32
    %44 = vector.broadcast %cst_13 : f32 to vector<1x8x8xf32>
    %45 = arith.mulf %44, %36 : vector<1x8x8xf32>
    %46 = arith.addf %43, %45 : vector<1x8x8xf32>
    %47 = arith.subf %40, %38 : vector<1x8x8xf32>
    %48 = vector.extract_strided_slice %46 {offsets = [0, 0, 0], sizes = [1, 8, 7], strides = [1, 1, 1]} : vector<1x8x8xf32> to vector<1x8x7xf32>
    %49 = tpu.concatenate %1, %48 in 2 : vector<1x8x1xf32>, vector<1x8x7xf32> -> vector<1x8x8xf32>
    %50 = vector.extract_strided_slice %46 {offsets = [0, 0, 1], sizes = [1, 8, 7], strides = [1, 1, 1]} : vector<1x8x8xf32> to vector<1x8x7xf32>
    %51 = tpu.concatenate %50, %1 in 2 : vector<1x8x7xf32>, vector<1x8x1xf32> -> vector<1x8x8xf32>
    %52 = vector.extract_strided_slice %47 {offsets = [0, 0, 0], sizes = [1, 8, 7], strides = [1, 1, 1]} : vector<1x8x8xf32> to vector<1x8x7xf32>
    %53 = tpu.concatenate %1, %52 in 2 : vector<1x8x1xf32>, vector<1x8x7xf32> -> vector<1x8x8xf32>
    %54 = vector.extract_strided_slice %47 {offsets = [0, 0, 1], sizes = [1, 8, 7], strides = [1, 1, 1]} : vector<1x8x8xf32> to vector<1x8x7xf32>
    %55 = tpu.concatenate %54, %1 in 2 : vector<1x8x7xf32>, vector<1x8x1xf32> -> vector<1x8x8xf32>
    %56 = arith.subf %51, %49 : vector<1x8x8xf32>
    %57 = arith.addf %53, %55 : vector<1x8x8xf32>
    %cst_14 = arith.constant 3.000000e+00 : f32
    %58 = vector.broadcast %cst_14 : f32 to vector<1x8x8xf32>
    %59 = arith.mulf %58, %57 : vector<1x8x8xf32>
    %cst_15 = arith.constant 1.000000e+01 : f32
    %60 = vector.broadcast %cst_15 : f32 to vector<1x8x8xf32>
    %61 = arith.mulf %60, %47 : vector<1x8x8xf32>
    %62 = arith.addf %59, %61 : vector<1x8x8xf32>
    %63 = arith.mulf %56, %56 : vector<1x8x8xf32>
    %64 = arith.mulf %62, %62 : vector<1x8x8xf32>
    %65 = arith.addf %63, %64 : vector<1x8x8xf32>
    %66 = arith.addf %34, %65 : vector<1x8x8xf32>
    %c0_16 = arith.constant 0 : index
    %c2 = arith.constant 2 : index
    %c0_17 = arith.constant 0 : index
    %c0_18 = arith.constant 0 : index
    %67 = vector.load %arg1[%c0_16, %c2, %c0_17, %c0_18] : memref<1x4x8x8xf32, #tpu.memory_space<vmem>>, vector<1x1x8x8xf32>
    %68 = vector.shape_cast %67 : vector<1x1x8x8xf32> to vector<1x8x8xf32>
    %69 = vector.extract_strided_slice %68 {offsets = [0, 0, 0], sizes = [1, 7, 8], strides = [1, 1, 1]} : vector<1x8x8xf32> to vector<1x7x8xf32>
    %70 = tpu.concatenate %0, %69 in 1 : vector<1x1x8xf32>, vector<1x7x8xf32> -> vector<1x8x8xf32>
    %71 = vector.extract_strided_slice %68 {offsets = [0, 1, 0], sizes = [1, 7, 8], strides = [1, 1, 1]} : vector<1x8x8xf32> to vector<1x7x8xf32>
    %72 = tpu.concatenate %71, %0 in 1 : vector<1x7x8xf32>, vector<1x1x8xf32> -> vector<1x8x8xf32>
    %73 = arith.addf %70, %72 : vector<1x8x8xf32>
    %cst_19 = arith.constant 3.000000e+00 : f32
    %74 = vector.broadcast %cst_19 : f32 to vector<1x8x8xf32>
    %75 = arith.mulf %74, %73 : vector<1x8x8xf32>
    %cst_20 = arith.constant 1.000000e+01 : f32
    %76 = vector.broadcast %cst_20 : f32 to vector<1x8x8xf32>
    %77 = arith.mulf %76, %68 : vector<1x8x8xf32>
    %78 = arith.addf %75, %77 : vector<1x8x8xf32>
    %79 = arith.subf %72, %70 : vector<1x8x8xf32>
    %80 = vector.extract_strided_slice %78 {offsets = [0, 0, 0], sizes = [1, 8, 7], strides = [1, 1, 1]} : vector<1x8x8xf32> to vector<1x8x7xf32>
    %81 = tpu.concatenate %1, %80 in 2 : vector<1x8x1xf32>, vector<1x8x7xf32> -> vector<1x8x8xf32>
    %82 = vector.extract_strided_slice %78 {offsets = [0, 0, 1], sizes = [1, 8, 7], strides = [1, 1, 1]} : vector<1x8x8xf32> to vector<1x8x7xf32>
    %83 = tpu.concatenate %82, %1 in 2 : vector<1x8x7xf32>, vector<1x8x1xf32> -> vector<1x8x8xf32>
    %84 = vector.extract_strided_slice %79 {offsets = [0, 0, 0], sizes = [1, 8, 7], strides = [1, 1, 1]} : vector<1x8x8xf32> to vector<1x8x7xf32>
    %85 = tpu.concatenate %1, %84 in 2 : vector<1x8x1xf32>, vector<1x8x7xf32> -> vector<1x8x8xf32>
    %86 = vector.extract_strided_slice %79 {offsets = [0, 0, 1], sizes = [1, 8, 7], strides = [1, 1, 1]} : vector<1x8x8xf32> to vector<1x8x7xf32>
    %87 = tpu.concatenate %86, %1 in 2 : vector<1x8x7xf32>, vector<1x8x1xf32> -> vector<1x8x8xf32>
    %88 = arith.subf %83, %81 : vector<1x8x8xf32>
    %89 = arith.addf %85, %87 : vector<1x8x8xf32>
    %cst_21 = arith.constant 3.000000e+00 : f32
    %90 = vector.broadcast %cst_21 : f32 to vector<1x8x8xf32>
    %91 = arith.mulf %90, %89 : vector<1x8x8xf32>
    %cst_22 = arith.constant 1.000000e+01 : f32
    %92 = vector.broadcast %cst_22 : f32 to vector<1x8x8xf32>
    %93 = arith.mulf %92, %79 : vector<1x8x8xf32>
    %94 = arith.addf %91, %93 : vector<1x8x8xf32>
    %95 = arith.mulf %88, %88 : vector<1x8x8xf32>
    %96 = arith.mulf %94, %94 : vector<1x8x8xf32>
    %97 = arith.addf %95, %96 : vector<1x8x8xf32>
    %98 = arith.addf %66, %97 : vector<1x8x8xf32>
    %c0_23 = arith.constant 0 : index
    %c3 = arith.constant 3 : index
    %c0_24 = arith.constant 0 : index
    %c0_25 = arith.constant 0 : index
    %99 = vector.load %arg1[%c0_23, %c3, %c0_24, %c0_25] : memref<1x4x8x8xf32, #tpu.memory_space<vmem>>, vector<1x1x8x8xf32>
    %100 = vector.shape_cast %99 : vector<1x1x8x8xf32> to vector<1x8x8xf32>
    %101 = vector.extract_strided_slice %100 {offsets = [0, 0, 0], sizes = [1, 7, 8], strides = [1, 1, 1]} : vector<1x8x8xf32> to vector<1x7x8xf32>
    %102 = tpu.concatenate %0, %101 in 1 : vector<1x1x8xf32>, vector<1x7x8xf32> -> vector<1x8x8xf32>
    %103 = vector.extract_strided_slice %100 {offsets = [0, 1, 0], sizes = [1, 7, 8], strides = [1, 1, 1]} : vector<1x8x8xf32> to vector<1x7x8xf32>
    %104 = tpu.concatenate %103, %0 in 1 : vector<1x7x8xf32>, vector<1x1x8xf32> -> vector<1x8x8xf32>
    %105 = arith.addf %102, %104 : vector<1x8x8xf32>
    %cst_26 = arith.constant 3.000000e+00 : f32
    %106 = vector.broadcast %cst_26 : f32 to vector<1x8x8xf32>
    %107 = arith.mulf %106, %105 : vector<1x8x8xf32>
    %cst_27 = arith.constant 1.000000e+01 : f32
    %108 = vector.broadcast %cst_27 : f32 to vector<1x8x8xf32>
    %109 = arith.mulf %108, %100 : vector<1x8x8xf32>
    %110 = arith.addf %107, %109 : vector<1x8x8xf32>
    %111 = arith.subf %104, %102 : vector<1x8x8xf32>
    %112 = vector.extract_strided_slice %110 {offsets = [0, 0, 0], sizes = [1, 8, 7], strides = [1, 1, 1]} : vector<1x8x8xf32> to vector<1x8x7xf32>
    %113 = tpu.concatenate %1, %112 in 2 : vector<1x8x1xf32>, vector<1x8x7xf32> -> vector<1x8x8xf32>
    %114 = vector.extract_strided_slice %110 {offsets = [0, 0, 1], sizes = [1, 8, 7], strides = [1, 1, 1]} : vector<1x8x8xf32> to vector<1x8x7xf32>
    %115 = tpu.concatenate %114, %1 in 2 : vector<1x8x7xf32>, vector<1x8x1xf32> -> vector<1x8x8xf32>
    %116 = vector.extract_strided_slice %111 {offsets = [0, 0, 0], sizes = [1, 8, 7], strides = [1, 1, 1]} : vector<1x8x8xf32> to vector<1x8x7xf32>
    %117 = tpu.concatenate %1, %116 in 2 : vector<1x8x1xf32>, vector<1x8x7xf32> -> vector<1x8x8xf32>
    %118 = vector.extract_strided_slice %111 {offsets = [0, 0, 1], sizes = [1, 8, 7], strides = [1, 1, 1]} : vector<1x8x8xf32> to vector<1x8x7xf32>
    %119 = tpu.concatenate %118, %1 in 2 : vector<1x8x7xf32>, vector<1x8x1xf32> -> vector<1x8x8xf32>
    %120 = arith.subf %115, %113 : vector<1x8x8xf32>
    %121 = arith.addf %117, %119 : vector<1x8x8xf32>
    %cst_28 = arith.constant 3.000000e+00 : f32
    %122 = vector.broadcast %cst_28 : f32 to vector<1x8x8xf32>
    %123 = arith.mulf %122, %121 : vector<1x8x8xf32>
    %cst_29 = arith.constant 1.000000e+01 : f32
    %124 = vector.broadcast %cst_29 : f32 to vector<1x8x8xf32>
    %125 = arith.mulf %124, %111 : vector<1x8x8xf32>
    %126 = arith.addf %123, %125 : vector<1x8x8xf32>
    %127 = arith.mulf %120, %120 : vector<1x8x8xf32>
    %128 = arith.mulf %126, %126 : vector<1x8x8xf32>
    %129 = arith.addf %127, %128 : vector<1x8x8xf32>
    %130 = arith.addf %98, %129 : vector<1x8x8xf32>
    %cst_30 = arith.constant 9.765625E-4 : f32
    %131 = vector.broadcast %cst_30 : f32 to vector<1x8x8xf32>
    %132 = arith.mulf %130, %131 : vector<1x8x8xf32>
    %133 = math.sqrt %132 : vector<1x8x8xf32>
    %c0_31 = arith.constant 0 : index
    %c0_32 = arith.constant 0 : index
    %c0_33 = arith.constant 0 : index
    %c0_34 = arith.constant 0 : index
    %134 = vector.load %arg2[%c0_31, %c0_32, %c0_33, %c0_34] : memref<1x1x8x8xf32, #tpu.memory_space<vmem>>, vector<1x1x8x8xf32>
    %135 = vector.shape_cast %134 : vector<1x1x8x8xf32> to vector<1x8x8xf32>
    %136 = vector.shape_cast %133 : vector<1x8x8xf32> to vector<1x1x8x8xf32>
    tpu.vector_store %arg2[%c0_31, %c0_32, %c0_33, %c0_34], %136 {strides = array<i32>} : memref<1x1x8x8xf32, #tpu.memory_space<vmem>>, vector<1x1x8x8xf32>,
    return
  }
  func.func @transform_0(%arg0: i32) -> (i32, i32, i32, i32) {
    %c0_i32 = arith.constant 0 : i32
    %c0_i32_0 = arith.constant 0 : i32
    %c0_i32_1 = arith.constant 0 : i32
    %c0_i32_2 = arith.constant 0 : i32
    return %arg0, %c0_i32, %c0_i32_0, %c0_i32_1 : i32, i32, i32, i32
  }
  func.func @transform_1(%arg0: i32) -> (i32, i32, i32, i32) {
    %c0_i32 = arith.constant 0 : i32
    %c0_i32_0 = arith.constant 0 : i32
    %c0_i32_1 = arith.constant 0 : i32
    %c0_i32_2 = arith.constant 0 : i32
    return %arg0, %c0_i32, %c0_i32_0, %c0_i32_1 : i32, i32, i32, i32
  }
}

</mosaic_0001>

<llo_original>
// kernel: tpu_custom_call.1
$region0: #{tpu_custom_call.1}
  #allocation0 [shape = 'u32[]', space=smem, size = 0x4, offset = 0x4, fixed_abs, tag = 'smem constant byte address 0x4 - core index']
  #allocation1 [shape = 'u32[72,128]{1,0:T(1,128)}', space=vmem, size = 0x9000, scoped, tag = 'internal scratch']
  %s0 = inlined_call_operand.hbm [shape: f32[2,4,8,8], index: 0, kind: input, shape index: {}]
  %s1 = inlined_call_operand.hbm [shape: f32[2,1,8,8], index: 1, kind: output, shape index: {}]
  %s2 = sld [smem:[#allocation0]]
  $region41: #{tpu_custom_call.1} parent=0
    _
  %s4 = ssub.s32 1, %s2
  %s5 = scalar_select 0, %s4, %s2
  $region1: #{tpu_custom_call.1} parent=0
    #allocation2 [shape = 'u8[32768]{0}', space=vmem, size = 0x8000, scoped, tag = 'input window, operand 0']
    #allocation3 [shape = 's32[2]{0}', space=sflag, size = 0x8, scoped, tag = 'scoped memory for tpu_custom_call.1']
    #allocation4 [shape = 's32[2]{0}', space=sflag, size = 0x8, scoped, tag = 'scoped memory for tpu_custom_call.1']
    #allocation5 [shape = 'u8[8192]{0}', space=vmem, size = 0x2000, scoped, tag = 'output window, operand 0']
    %6 = vsyncpa [#allocation3], 0
    %s7 = scalar_lea.sflag [#allocation3], 1
    %8 = vsyncpa %s7, 0
    %9 = vsyncpa [#allocation4], 0
    %s10 = scalar_lea.sflag [#allocation4], 1
    %11 = vsyncpa %s10, 0
    loop: start=0, step=1, limit=4
    $region2: #{tpu_custom_call.1} parent=1 // loop_pre_header
      _
    $region3: #{tpu_custom_call.1} parent=1 // loop_header
      %s13 = sphi 0, %s17
      %p14 = scmp.ge.s32.totalorder %s13, 4
      %s23 = sphi 0, %s25
      %s26 = sphi 0, %s23
      %s27 = sphi 0, %s26
      %s43 = sphi 0, %s27
      %s49 = sphi 0, %s51
      %s52 = sphi 0, %s49
      %s53 = sphi 0, %s52
      %s69 = sphi 0, %s53
    $region4: #{tpu_custom_call.1} parent=1 // loop_header_branch
      %16 = sbr.rel (%p14) target = $region8
    $region5: #{tpu_custom_call.1} parent=1 // loop_body
      %s18 = ssub.s32 %s13, 1
      %s19 = ssub.s32 %s13, 2
      %s20 = sadd.s32 %s13, 1
      %s21 = ssub.s32 %s13, %s20
      %p22 = scmp.eq.s32.totalorder %s21, 0
      %s24 = sadd.s32 %s23, 1
      %s25 = scalar_select %p22, %s23, %s24
      %p28 = pneg %p22
      %p29 = scmp.eq.s32.totalorder %s13, 1
      %p30 = por %p28, %p29
      %p31 = scmp.ne.s32.totalorder %s23, %s26
      %p32 = scmp.eq.s32.totalorder %s13, 0
      %p33 = por %p31, %p32
      %p34 = scmp.ne.s32.totalorder %s23, %s26
      %p35 = scmp.eq.s32.totalorder %s18, 1
      %p36 = por %p34, %p35
      %p37 = scmp.ne.s32.totalorder %s26, %s27
      %p38 = scmp.eq.s32.totalorder %s18, 0
      %p39 = por %p37, %p38
      %p40 = scmp.ne.s32.totalorder %s26, %s27
      %p41 = scmp.eq.s32.totalorder %s19, 1
      %p42 = por %p40, %p41
      %p44 = scmp.ne.s32.totalorder %s27, %s43
      %p45 = scmp.eq.s32.totalorder %s19, 0
      %p46 = por %p44, %p45
      %s47 = ssub.s32 %s13, %s20
      %p48 = scmp.eq.s32.totalorder %s47, 0
      %s50 = sadd.s32 %s49, 1
      %s51 = scalar_select %p48, %s49, %s50
      %p54 = pneg %p48
      %p55 = scmp.eq.s32.totalorder %s13, 1
      %p56 = por %p54, %p55
      %p57 = scmp.ne.s32.totalorder %s49, %s52
      %p58 = scmp.eq.s32.totalorder %s13, 0
      %p59 = por %p57, %p58
      %p60 = scmp.ne.s32.totalorder %s49, %s52
      %p61 = scmp.eq.s32.totalorder %s18, 1
      %p62 = por %p60, %p61
      %p63 = scmp.ne.s32.totalorder %s52, %s53
      %p64 = scmp.eq.s32.totalorder %s18, 0
      %p65 = por %p63, %p64
      %p66 = scmp.ne.s32.totalorder %s52, %s53
      %p67 = scmp.eq.s32.totalorder %s19, 1
      %p68 = por %p66, %p67
      %p70 = scmp.ne.s32.totalorder %s53, %s69
      %p71 = scmp.eq.s32.totalorder %s19, 0
      %p72 = por %p70, %p71
      %p73 = scmp.le.s32.totalorder 1, %s13
      %p74 = scmp.lt.s32.totalorder %s13, 3
      %p75 = pnand %p73, %p74
      %p76 = pneg %p75
      // Predicated region
      $region9: #{tpu_custom_call.1} parent=5 // pred_check
        _
      $region10: #{tpu_custom_call.1} parent=5 // pred_check_branch
        %78 = sbr.rel (%p75) target = $region12
      $region11: #{tpu_custom_call.1} parent=5 // pred_region
        %s79 = ssub.s32 %s13, 1
      $region12: #{tpu_custom_call.1} parent=5 // pred_fallthru
        _
      %p80 = scmp.lt.s32.totalorder %s13, 2
      // Predicated region
      $region13: #{tpu_custom_call.1} parent=5 // pred_check
        %p81 = pneg %p80
      $region14: #{tpu_custom_call.1} parent=5 // pred_check_branch
        %83 = sbr.rel (%p81) target = $region16
      $region15: #{tpu_custom_call.1} parent=5 // pred_region
        // Predicated region
        $region17: #{tpu_custom_call.1} parent=15 // pred_check
          %p84 = pneg %p33
        $region18: #{tpu_custom_call.1} parent=15 // pred_check_branch
          %86 = sbr.rel (%p84) target = $region20
        $region19: #{tpu_custom_call.1} parent=15 // pred_region
          %s87 = sand.u32 %s23, 1
          %s88 = scalar_lea.sflag [#allocation3], %s87
          %s89 = sand.u32 %s23, 1
          %s90 = smul.addr %s89, 32
          %s91 = scalar_lea.vmem [#allocation2], %s90
          %93 = vsyncadd %s88, 0
          %s94 = smul.addr %s13, 4
          %s95 = smul.addr %s94, 8
          %s96 = scalar_lea.hbm %s0, %s95
          %s97 = sshll.u32 %s96, 4
          %s98 = int_to_ptr.hbm [resolvable:$true] %s97
          %s99 = sshll.u32 %s91, 4
          %s100 = int_to_ptr.vmem [resolvable:$true] %s99
          %105 = dma.hbm_to_vmem [thread:$0]  %s98, 512, %s100, %s88, 128, 128, 8
        $region20: #{tpu_custom_call.1} parent=15 // pred_fallthru
          _
      $region16: #{tpu_custom_call.1} parent=5 // pred_fallthru
        _
      %p106 = scmp.le.s32.totalorder 1, %s13
      %p107 = scmp.lt.s32.totalorder %s13, 3
      %p108 = pnand %p106, %p107
      %p109 = pneg %p108
      // Predicated region
      $region21: #{tpu_custom_call.1} parent=5 // pred_check
        _
      $region22: #{tpu_custom_call.1} parent=5 // pred_check_branch
        %111 = sbr.rel (%p108) target = $region24
      $region23: #{tpu_custom_call.1} parent=5 // pred_region
        %s112 = ssub.s32 %s13, 1
        %s113 = sand.u32 %s26, 1
        %s114 = scalar_lea.sflag [#allocation3], %s113
        %s115 = sand.u32 %s26, 1
        %s116 = smul.addr %s115, 32
        %s117 = scalar_lea.vmem [#allocation2], %s116
        // Predicated region
        $region25: #{tpu_custom_call.1} parent=23 // pred_check
          %p118 = pneg %p39
        $region26: #{tpu_custom_call.1} parent=23 // pred_check_branch
          %120 = sbr.rel (%p118) target = $region28
        $region27: #{tpu_custom_call.1} parent=23 // pred_region
          %122 = dma.done %s114, 512
        $region28: #{tpu_custom_call.1} parent=23 // pred_fallthru
          _
        %s123 = sand.u32 %s26, 1
        %s124 = scalar_lea.sflag [#allocation3], %s123
        %s125 = sand.u32 %s26, 1
        %s126 = smul.addr %s125, 32
        %s127 = scalar_lea.vmem [#allocation2], %s126
        %p128 = pneg %p39
        %p129 = pneg %p36
        %p130 = pneg %p65
        %p131 = pneg %p62
        %s132 = sand.u32 %s52, 1
        %s133 = scalar_lea.sflag [#allocation4], %s132
        %s134 = sand.u32 %s52, 1
        %s135 = smul.addr %s134, 8
        %s136 = scalar_lea.vmem [#allocation5], %s135
        %v137 = vld [vmem:[%s117] sm:$0xff]
        %v139 = vrot.slane %v137, 7
        %vm141 = vcmask 1040384
        %v142 = vsel %vm141, 0.0, %v139
        %v143 = vrot.slane %v137, 1
        %vm145 = vcmask 1046528
        %v146 = vsel %vm145, %v143, 0.0
        %v147 = vadd.f32 %v142, %v146
        %v148 = vmul.f32 %v147, 3.0
        %v149 = vmul.f32 %v137, 10.0
        %v150 = vadd.f32 %v148, %v149
        %v151 = vsub.f32 %v146, %v142
        %153 = vrot.lane.b32.xlu0 %v150, 1
        %v154 = vpop.permute.xlu0 %153
        %vm156 = vcmask 7168
        %v157 = vsel %vm156, 0.0, %v154
        %158 = vrot.lane.b32.xlu0 %v150, 127
        %v159 = vpop.permute.xlu0 %158
        %vm161 = vcmask 56320
        %v162 = vsel %vm161, %v159, 0.0
        %164 = vrot.lane.b32.xlu0 %v151, 1
        %v165 = vpop.permute.xlu0 %164
        %v167 = vsel %vm156, 0.0, %v165
        %168 = vrot.lane.b32.xlu0 %v151, 127
        %v169 = vpop.permute.xlu0 %168
        %v171 = vsel %vm161, %v169, 0.0
        %v172 = vsub.f32 %v162, %v157
        %v173 = vadd.f32 %v167, %v171
        %v174 = vmul.f32 %v173, 3.0
        %v175 = vmul.f32 %v151, 10.0
        %v176 = vadd.f32 %v174, %v175
        %v177 = vmul.f32 %v172, %v172
        %v178 = vmul.f32 %v176, %v176
        %v179 = vadd.f32 %v177, %v178
        %v180 = vadd.f32 %v179, 0.0
        %s181 = scalar_lea.vmem %s117, 8 [#allocation2]
        %v182 = vld [vmem:[%s181] sm:$0xff]
        %v184 = vrot.slane %v182, 7
        %v186 = vsel %vm141, 0.0, %v184
        %v187 = vrot.slane %v182, 1
        %v189 = vsel %vm145, %v187, 0.0
        %v190 = vadd.f32 %v186, %v189
        %v191 = vmul.f32 %v190, 3.0
        %v192 = vmul.f32 %v182, 10.0
        %v193 = vadd.f32 %v191, %v192
        %v194 = vsub.f32 %v189, %v186
        %196 = vrot.lane.b32.xlu0 %v193, 1
        %v197 = vpop.permute.xlu0 %196
        %v199 = vsel %vm156, 0.0, %v197
        %200 = vrot.lane.b32.xlu0 %v193, 127
        %v201 = vpop.permute.xlu0 %200
        %v203 = vsel %vm161, %v201, 0.0
        %205 = vrot.lane.b32.xlu0 %v194, 1
        %v206 = vpop.permute.xlu0 %205
        %v208 = vsel %vm156, 0.0, %v206
        %209 = vrot.lane.b32.xlu0 %v194, 127
        %v210 = vpop.permute.xlu0 %209
        %v212 = vsel %vm161, %v210, 0.0
        %v213 = vsub.f32 %v203, %v199
        %v214 = vadd.f32 %v208, %v212
        %v215 = vmul.f32 %v214, 3.0
        %v216 = vmul.f32 %v194, 10.0
        %v217 = vadd.f32 %v215, %v216
        %v218 = vmul.f32 %v213, %v213
        %v219 = vmul.f32 %v217, %v217
        %v220 = vadd.f32 %v218, %v219
        %v221 = vadd.f32 %v180, %v220
        %s222 = scalar_lea.vmem %s117, 16 [#allocation2]
        %v223 = vld [vmem:[%s222] sm:$0xff]
        %v225 = vrot.slane %v223, 7
        %v227 = vsel %vm141, 0.0, %v225
        %v228 = vrot.slane %v223, 1
        %v230 = vsel %vm145, %v228, 0.0
        %v231 = vadd.f32 %v227, %v230
        %v232 = vmul.f32 %v231, 3.0
        %v233 = vmul.f32 %v223, 10.0
        %v234 = vadd.f32 %v232, %v233
        %v235 = vsub.f32 %v230, %v227
        %237 = vrot.lane.b32.xlu0 %v234, 1
        %v238 = vpop.permute.xlu0 %237
        %v240 = vsel %vm156, 0.0, %v238
        %241 = vrot.lane.b32.xlu0 %v234, 127
        %v242 = vpop.permute.xlu0 %241
        %v244 = vsel %vm161, %v242, 0.0
        %246 = vrot.lane.b32.xlu0 %v235, 1
        %v247 = vpop.permute.xlu0 %246
        %v249 = vsel %vm156, 0.0, %v247
        %250 = vrot.lane.b32.xlu0 %v235, 127
        %v251 = vpop.permute.xlu0 %250
        %v253 = vsel %vm161, %v251, 0.0
        %v254 = vsub.f32 %v244, %v240
        %v255 = vadd.f32 %v249, %v253
        %v256 = vmul.f32 %v255, 3.0
        %v257 = vmul.f32 %v235, 10.0
        %v258 = vadd.f32 %v256, %v257
        %v259 = vmul.f32 %v254, %v254
        %v260 = vmul.f32 %v258, %v258
        %v261 = vadd.f32 %v259, %v260
        %v262 = vadd.f32 %v221, %v261
        %s263 = scalar_lea.vmem %s117, 24 [#allocation2]
        %v264 = vld [vmem:[%s263] sm:$0xff]
        %v266 = vrot.slane %v264, 7
        %v268 = vsel %vm141, 0.0, %v266
        %v269 = vrot.slane %v264, 1
        %v271 = vsel %vm145, %v269, 0.0
        %v272 = vadd.f32 %v268, %v271
        %v273 = vmul.f32 %v272, 3.0
        %v274 = vmul.f32 %v264, 10.0
        %v275 = vadd.f32 %v273, %v274
        %v276 = vsub.f32 %v271, %v268
        %278 = vrot.lane.b32.xlu0 %v275, 1
        %v279 = vpop.permute.xlu0 %278
        %v281 = vsel %vm156, 0.0, %v279
        %282 = vrot.lane.b32.xlu0 %v275, 127
        %v283 = vpop.permute.xlu0 %282
        %v285 = vsel %vm161, %v283, 0.0
        %287 = vrot.lane.b32.xlu0 %v276, 1
        %v288 = vpop.permute.xlu0 %287
        %v290 = vsel %vm156, 0.0, %v288
        %291 = vrot.lane.b32.xlu0 %v276, 127
        %v292 = vpop.permute.xlu0 %291
        %v294 = vsel %vm161, %v292, 0.0
        %v295 = vsub.f32 %v285, %v281
        %v296 = vadd.f32 %v290, %v294
        %v297 = vmul.f32 %v296, 3.0
        %v298 = vmul.f32 %v276, 10.0
        %v299 = vadd.f32 %v297, %v298
        %v300 = vmul.f32 %v295, %v295
        %v301 = vmul.f32 %v299, %v299
        %v302 = vadd.f32 %v300, %v301
        %v303 = vadd.f32 %v262, %v302
        %v304 = vmul.f32 %v303, 0.0009765625
        %v305 = vrsqrt.pop %v304
        %v306 = vmul.f32 %v305, %v304
        %v307 = vmul.f32 %v306, %v305
        %v308 = vmul.f32 0.5, %v307
        %v309 = vsub.f32 1.5, %v308
        %v310 = vmul.f32 %v305, %v309
        %v311 = vmul.f32 %v304, %v310
        %vm312 = vcmp.eq.f32.partialorder %v304, inf
        %v313 = vsel %vm312, %v304, %v311
        %vm314 = vcmp.eq.f32.partialorder %v304, 0.0
        %v315 = vand.u32 %v304, 2147483648
        %v316 = vsel %vm314, %v315, %v313
        %vm317 = vcmask 64512
        %318 = vst.msk [vmem:[%s136] sm:$0xff] %vm317, %v316
        %s319 = sand.u32 %s52, 1
        %s320 = scalar_lea.sflag [#allocation4], %s319
        %s321 = sand.u32 %s52, 1
        %s322 = smul.addr %s321, 8
        %s323 = scalar_lea.vmem [#allocation5], %s322
        // Predicated region
        $region29: #{tpu_custom_call.1} parent=23 // pred_check
          %p324 = pneg %p62
        $region30: #{tpu_custom_call.1} parent=23 // pred_check_branch
          %326 = sbr.rel (%p324) target = $region32
        $region31: #{tpu_custom_call.1} parent=23 // pred_region
          %328 = vsyncadd %s320, 0
          %s329 = smul.addr %s18, 8
          %s330 = scalar_lea.hbm %s1, %s329
          %s332 = sshll.u32 %s323, 4
          %s333 = int_to_ptr.vmem [resolvable:$true] %s332
          %s334 = sshll.u32 %s330, 4
          %s335 = int_to_ptr.hbm [resolvable:$true] %s334
          %337 = dma.vmem_to_hbm [thread:$0]  %s333, 128, %s335, %s320
        $region32: #{tpu_custom_call.1} parent=23 // pred_fallthru
          _
      $region24: #{tpu_custom_call.1} parent=5 // pred_fallthru
        _
      %p338 = scmp.le.s32.totalorder 2, %s13
      // Predicated region
      $region33: #{tpu_custom_call.1} parent=5 // pred_check
        %p339 = pneg %p338
      $region34: #{tpu_custom_call.1} parent=5 // pred_check_branch
        %341 = sbr.rel (%p339) target = $region36
      $region35: #{tpu_custom_call.1} parent=5 // pred_region
        %s342 = ssub.s32 %s13, 2
        // Predicated region
        $region37: #{tpu_custom_call.1} parent=35 // pred_check
          %p343 = pneg %p68
        $region38: #{tpu_custom_call.1} parent=35 // pred_check_branch
          %345 = sbr.rel (%p343) target = $region40
        $region39: #{tpu_custom_call.1} parent=35 // pred_region
          %s346 = sand.u32 %s53, 1
          %s347 = scalar_lea.sflag [#allocation4], %s346
          %s348 = sand.u32 %s53, 1
          %s349 = smul.addr %s348, 8
          %s350 = scalar_lea.vmem [#allocation5], %s349
          %352 = dma.done %s347, 128
        $region40: #{tpu_custom_call.1} parent=35 // pred_fallthru
          _
      $region36: #{tpu_custom_call.1} parent=5 // pred_fallthru
        _
    $region6: #{tpu_custom_call.1} parent=1 // loop_footer
      %s17 = sadd.s32 1, %s13
    $region7: #{tpu_custom_call.1} parent=1 // loop_footer_branch
      %12 = sbr.rel target = $region3
    $region8: #{tpu_custom_call.1} parent=1 // loop_exit
      _
    %353 = vsyncpa [#allocation3], 1
    %s354 = scalar_lea.sflag [#allocation3], 1
    %355 = vsyncpa %s354, 1
    %356 = vsyncpa [#allocation4], 1
    %s357 = scalar_lea.sflag [#allocation4], 1
    %358 = vsyncpa %s357, 1

</llo_original>
